<compile_context>
chip_gen: v6e
topology: v6e:2x2x1
jax: 0.10.0
libtpu: 0.0.40
codegen_flags: <defaults>
</compile_context>

<pallas_src>
import functools

import jax
import jax.numpy as jnp
from jax import lax
from jax.experimental import pallas as pl
from jax.experimental.pallas import tpu as pltpu

NEG_SLOPE = 0.1   # nn.LeakyReLU(0.1)
BN_EPS = 1e-5     # nn.BatchNorm1d default eps
BIAS_BAND = 16    # ones-band height of the packed slab (one bf16 sublane tile)


# ---------------------------------------------------------------------------
# Pallas kernel: one batch-chunk (C, NB*L) tile per grid step, all branches fused.
# ---------------------------------------------------------------------------
def _res_inception_kernel(x_ref, w_ref, o_ref, pack_ref, *, C, L):
    """x_ref (C, NB*L) bf16, w_ref (4, C, 3C+BIAS_BAND) bf16, o_ref (C, NB*L) f32,
    pack_ref (3C+BIAS_BAND, NB*L) bf16 VMEM scratch for the packed slab."""
    P = C // 4
    NL = x_ref.shape[1]
    cd = x_ref.dtype                      # bf16 MXU compute dtype

    # Constant-ones band of the slab: every per-stage bias add becomes one MXU column.
    pack_ref[pl.ds(3 * C, BIAS_BAND), :] = jnp.ones((BIAS_BAND, NL), cd)

    # Per-batch-element conv boundaries: lanes where a roll wrapped around (or crossed
    # into the neighbouring batch element) are zeroed — the conv's "same" zero padding.
    lane = lax.broadcasted_iota(jnp.int32, (1, NL), 1)
    pos = lane % L
    # Hoisted (C, NL) multiplicative masks (JAX does not CSE broadcasts inside the loop).
    mask_prev = jnp.broadcast_to((pos != 0).astype(jnp.float32), (C, NL))
    mask_next = jnp.broadcast_to((pos != (L - 1)).astype(jnp.float32), (C, NL))

    # Per-row LeakyReLU slopes: act(v) = max(v, slope*v); slope==1 rows pass through.
    row = lax.broadcasted_iota(jnp.int32, (C, 1), 0)
    slope1 = jnp.where(row >= P, NEG_SLOPE, 1.0)        # stage 0: branches 2/3/4
    slope23 = jnp.where(row >= 3 * P, NEG_SLOPE, 1.0)   # stages 1/2: branch 4 only

    def act(v, slope):
        return jnp.maximum(v, slope * v)

    def stage(i, s):
        # +-1 position shifts on the XLU (pltpu.roll, jnp.roll semantics), boundary lanes
        # zeroed; the slab [prev; cur; next; ones] goes through ONE MXU matmul.
        prev = pltpu.roll(s, shift=1, axis=1) * mask_prev
        nxt = pltpu.roll(s, shift=NL - 1, axis=1) * mask_next
        pack_ref[pl.ds(0, C), :] = prev.astype(cd)
        pack_ref[pl.ds(C, C), :] = s.astype(cd)
        pack_ref[pl.ds(2 * C, C), :] = nxt.astype(cd)
        return jnp.dot(w_ref[i], pack_ref[...], preferred_element_type=jnp.float32)

    x = x_ref[...].astype(jnp.float32)    # (C, NL) f32: stage-0 input + residual

    # Stage 0: the four branch 1x1 convs (+folded BN, +bias) in one matmul (the prev/next
    # tap columns of w_ref[0] are zero).  LeakyReLU on branches 2/3/4 only.
    a = act(stage(0, x), slope1)
    # Stages 1/2: branch3's conv (same weights twice — module quirk) + branch4 chain;
    # LeakyReLU only on branch 4's rows.  branch1/branch2 ride on identity blocks.
    s2 = act(stage(1, a), slope23)
    s3 = act(stage(2, s2), slope23)
    # Stage 3: final convs of branches 2 and 4; no activation.
    s4 = stage(3, s3)

    # The channel concat became a plain add: every branch already sits at its
    # output-channel rows.  Residual add + final LeakyReLU in f32.
    y = x + s4
    o_ref[...] = jnp.maximum(y, NEG_SLOPE * y).astype(o_ref.dtype)


# ---------------------------------------------------------------------------
# Wrapper
# ---------------------------------------------------------------------------
def _pick_batch_block(N, L, target_lanes=1024):
    """How many batch elements to fold onto the lane axis per grid step."""
    nb = max(1, min(N, target_lanes // max(L, 1)))
    while N % nb:
        nb -= 1
    return nb


def res_inception_forward(x_ncl, w_all, batch_block=None):
    """x_ncl: (N, C, L) float32 (PyTorch Conv1d layout); w_all: (4, C, 3C+BIAS_BAND)."""
    N, C, L = x_ncl.shape
    assert C % 4 == 0                      # same assumption as the module
    nb = batch_block or _pick_batch_block(N, L)
    assert N % nb == 0
    assert (nb * L) % 128 == 0, "lane tile must stay a multiple of 128"

    # Fold batch onto lanes: (N, C, L) -> (C, N*L); cast the MXU operands to bf16.
    x_cl = jnp.transpose(x_ncl, (1, 0, 2)).reshape(C, N * L).astype(jnp.bfloat16)
    w_bf = w_all.astype(jnp.bfloat16)

    kernel = functools.partial(_res_inception_kernel, C=C, L=L)
    out = pl.pallas_call(
        kernel,
        out_shape=jax.ShapeDtypeStruct((C, N * L), jnp.float32),
        grid=(N // nb,),
        in_specs=[
            pl.BlockSpec((C, nb * L), lambda n: (0, n)),     # batch chunk on lanes
            pl.BlockSpec(w_bf.shape, lambda n: (0, 0, 0)),   # fused stage weights (+bias cols)
        ],
        out_specs=pl.BlockSpec((C, nb * L), lambda n: (0, n)),
        scratch_shapes=[pltpu.VMEM((w_all.shape[2], nb * L), jnp.bfloat16)],
        compiler_params=pltpu.CompilerParams(dimension_semantics=("parallel",)),
    )(x_cl, w_bf)

    return out.reshape(C, N, L).transpose(1, 0, 2)


# ---------------------------------------------------------------------------
# Deterministic parameter setup (synthetic; shapes from the module __init__)
# ---------------------------------------------------------------------------
def init_conv_bn(key, cin, cout, ksize):
    ks = jax.random.split(key, 6)
    return dict(
        w=0.2 * jax.random.normal(ks[0], (cout, cin, ksize), jnp.float32),
        b=0.1 * jax.random.normal(ks[1], (cout,), jnp.float32),
        gamma=1.0 + 0.1 * jax.random.normal(ks[2], (cout,), jnp.float32),
        beta=0.1 * jax.random.normal(ks[3], (cout,), jnp.float32),
        rmean=0.1 * jax.random.normal(ks[4], (cout,), jnp.float32),
        rvar=jax.random.uniform(ks[5], (cout,), jnp.float32, 0.5, 1.5),
    )


def fold_bn(p):
    # eval-mode BN folded into conv: y = scale*(conv(x)+b - rmean) + beta
    scale = p["gamma"] / jnp.sqrt(p["rvar"] + BN_EPS)
    w_f = p["w"] * scale[:, None, None]                  # (Cout, Cin, K)
    b_f = (p["b"] - p["rmean"]) * scale + p["beta"]      # (Cout,)
    return w_f, b_f


def pack_params(folded, C):
    """Pack the 9 folded conv(+BN) layers into one (4, C, 3C+BIAS_BAND) stage-weight array.

    Column layout of each stage matrix (matches the kernel's packed slab):
      [0,C)   : "prev" tap (input at l-1)    [C,2C)  : "cur" tap (input at l)
      [2C,3C) : "next" tap (input at l+1)    col 3C  : bias (multiplies the ones band)
    Row layout: [branch1 | branch2 | branch3 | branch4] output channels.
    """
    P = C // 4
    f32 = jnp.float32
    K = 3 * C + BIAS_BAND
    eye_p = jnp.eye(P, dtype=f32)

    def stage_matrix(slot_ops):
        W = jnp.zeros((C, K), f32)
        for s, (kind, name) in enumerate(slot_ops):
            r = s * P
            if kind == "id":                      # carry the slot unchanged (centre tap)
                W = W.at[r:r + P, C + r:C + r + P].set(eye_p)
            elif kind == "x1":                    # 1x1 conv of the full input (cur tap)
                w_f, b_f = folded[name]           # (P, C, 1), (P,)
                W = W.at[r:r + P, C:2 * C].set(w_f[:, :, 0])
                W = W.at[r:r + P, 3 * C].set(b_f)
            else:                                 # "c3": 3-tap conv on the slot's channels
                w_f, b_f = folded[name]           # (P, P, 3), (P,)
                for k in range(3):                # tap 0=prev, 1=cur, 2=next
                    W = W.at[r:r + P, k * C + r:k * C + r + P].set(w_f[:, :, k])
                W = W.at[r:r + P, 3 * C].set(b_f)
        return W

    W0 = stage_matrix([("x1", "b1_1"), ("x1", "b2_1"), ("x1", "b3_1"), ("x1", "b4_1")])
    W1 = stage_matrix([("id", None), ("id", None), ("c3", "b3_2"), ("c3", "b4_2")])
    W2 = stage_matrix([("id", None), ("id", None), ("c3", "b3_2"), ("c3", "b4_3")])
    W3 = stage_matrix([("id", None), ("c3", "b2_2"), ("id", None), ("c3", "b4_4")])
    return jnp.stack([W0, W1, W2, W3], axis=0)    # (4, C, 3C+BIAS_BAND) f32


# ---------------------------------------------------------------------------
# Pure-JAX reference (NCL layout) for validation
# ---------------------------------------------------------------------------
def conv1d_ref(x_ncl, w, b):
    K = w.shape[2]
    pad = K // 2
    L = x_ncl.shape[2]
    xp = jnp.pad(x_ncl, ((0, 0), (0, 0), (pad, pad)))
    y = sum(jnp.einsum("oi,nil->nol", w[:, :, k], xp[:, :, k:k + L]) for k in range(K))
    return y + b[None, :, None]


def reference_forward(x_ncl, folded):
    def cb(name, x, relu=False):
        w, b = folded[name]
        y = conv1d_ref(x, w, b)
        return jnp.where(y > 0, y, NEG_SLOPE * y) if relu else y

    b1 = cb("b1_1", x_ncl)
    b2 = cb("b2_2", cb("b2_1", x_ncl, relu=True))
    t3 = cb("b3_1", x_ncl, relu=True)
    b3 = cb("b3_2", cb("b3_2", t3))
    t4 = cb("b4_1", x_ncl, relu=True)
    t4 = cb("b4_2", t4, relu=True)
    t4 = cb("b4_3", t4, relu=True)
    b4 = cb("b4_4", t4)
    out = x_ncl + jnp.concatenate([b1, b2, b3, b4], axis=1)
    return jnp.where(out > 0, out, NEG_SLOPE * out)


# ---------------------------------------------------------------------------
if __name__ == "__main__":
    # inplanes=16 (divisible by 4 as the module asserts), planes=4, seq len 128
    # (L a multiple of 128 keeps every lane tile dense).
    N, C, L = 2, 16, 128
    P = C // 4

    key = jax.random.PRNGKey(0)
    kx, kp = jax.random.split(key)
    x = jax.random.normal(kx, (N, C, L), jnp.float32)

    layer_defs = [
        ("b1_1", C, P, 1),
        ("b2_1", C, P, 1), ("b2_2", P, P, 3),
        ("b3_1", C, P, 1), ("b3_2", P, P, 3),
        ("b4_1", C, P, 1), ("b4_2", P, P, 3), ("b4_3", P, P, 3), ("b4_4", P, P, 3),
    ]
    keys = jax.random.split(kp, len(layer_defs))

    folded = {}
    for (name, cin, cout, k), kk in zip(layer_defs, keys):
        folded[name] = fold_bn(init_conv_bn(kk, cin, cout, k))

    w_all = pack_params(folded, C)

    out = jax.block_until_ready(res_inception_forward(x, w_all))

    ref = jax.block_until_ready(reference_forward(x, folded))
    assert out.shape == (N, C, L), out.shape
    max_err = float(jnp.max(jnp.abs(out - ref)))
    ref_scale = float(jnp.max(jnp.abs(ref)))
    # Tolerance re-validated for bf16 MXU operands (f32 accumulation); still far below the
    # error a wrong shift direction / boundary mask / weight mapping would produce.
    assert max_err <= 3e-2 * ref_scale + 3e-2, (max_err, ref_scale)

    print("KERNEL_OK")
</pallas_src>

<mosaic_0001>
module attributes {stable_mosaic.version = 11 : i64} {
  func.func @_res_inception_kernel(%arg0: i32, %arg1: memref<16x256xbf16, #tpu.memory_space<vmem>>, %arg2: memref<4x16x64xbf16, #tpu.memory_space<vmem>>, %arg3: memref<16x256xf32, #tpu.memory_space<vmem>>, %arg4: memref<64x256xbf16, #tpu.memory_space<vmem>>) attributes {dimension_semantics = [#tpu.dimension_semantics<parallel>], iteration_bounds = array<i64: 1>, scalar_prefetch = 0 : i64, scratch_operands = 1 : i64, tpu.core_type = #tpu.core_type<tc>, window_params = [{transform_indices = @transform_0, window_bounds = array<i64: 16, 256>}, {pipeline_mode = #tpu.pipeline_mode<synchronous>, transform_indices = @transform_1, window_bounds = array<i64: 4, 16, 64>}, {transform_indices = @transform_2, window_bounds = array<i64: 16, 256>}]} {
    %cst = arith.constant 1.000000e+00 : bf16
    %0 = vector.broadcast %cst : bf16 to vector<16x256xbf16>
    %c48 = arith.constant 48 : index
    %c0 = arith.constant 0 : index
    %1 = vector.load %arg4[%c48, %c0] : memref<64x256xbf16, #tpu.memory_space<vmem>>, vector<16x256xbf16>
    tpu.vector_store %arg4[%c48, %c0], %0 {strides = array<i32>} : memref<64x256xbf16, #tpu.memory_space<vmem>>, vector<16x256xbf16>,
    %2 = tpu.iota {dimensions = array<i32: 1>} : vector<1x256xi32>
    %c128_i32 = arith.constant 128 : i32
    %c0_i32 = arith.constant 0 : i32
    %3 = arith.cmpi eq, %c128_i32, %c0_i32 : i32
    %c1_i32 = arith.constant 1 : i32
    %4 = arith.select %3, %c1_i32, %c128_i32 : i32
    %5 = vector.broadcast %4 : i32 to vector<1x256xi32>
    %6 = arith.remsi %2, %5 : vector<1x256xi32>
    %c0_i32_0 = arith.constant 0 : i32
    %7 = vector.broadcast %c0_i32_0 : i32 to vector<1x256xi32>
    %8 = arith.cmpi ne, %6, %7 : vector<1x256xi32>
    %c0_i32_1 = arith.constant 0 : i32
    %9 = vector.broadcast %c0_i32_1 : i32 to vector<1x256xi32>
    %10 = arith.cmpi slt, %6, %9 : vector<1x256xi32>
    %c0_i32_2 = arith.constant 0 : i32
    %11 = arith.cmpi slt, %4, %c0_i32_2 : i32
    %12 = vector.broadcast %11 : i1 to vector<1x256xi1>
    %13 = vector.broadcast %12 : vector<1x256xi1> to vector<1x256xi1>
    %14 = arith.xori %10, %13 : vector<1x256xi1>
    %15 = arith.andi %14, %8 : vector<1x256xi1>
    %16 = vector.broadcast %4 : i32 to vector<1x256xi32>
    %17 = arith.addi %6, %16 : vector<1x256xi32>
    %18 = arith.select %15, %17, %6 : vector<1x256xi1>, vector<1x256xi32>
    %c0_i32_3 = arith.constant 0 : i32
    %19 = vector.broadcast %c0_i32_3 : i32 to vector<1x256xi32>
    %20 = arith.cmpi ne, %18, %19 : vector<1x256xi32>
    %21 = arith.extui %20 : vector<1x256xi1> to vector<1x256xi32>
    %22 = arith.sitofp %21 : vector<1x256xi32> to vector<1x256xf32>
    %23 = vector.shape_cast %22 : vector<1x256xf32> to vector<1x256xf32>
    %24 = vector.broadcast %23 : vector<1x256xf32> to vector<16x256xf32>
    %c127_i32 = arith.constant 127 : i32
    %25 = vector.broadcast %c127_i32 : i32 to vector<1x256xi32>
    %26 = arith.cmpi ne, %18, %25 : vector<1x256xi32>
    %27 = arith.extui %26 : vector<1x256xi1> to vector<1x256xi32>
    %28 = arith.sitofp %27 : vector<1x256xi32> to vector<1x256xf32>
    %29 = vector.shape_cast %28 : vector<1x256xf32> to vector<1x256xf32>
    %30 = vector.broadcast %29 : vector<1x256xf32> to vector<16x256xf32>
    %31 = tpu.iota {dimensions = array<i32: 0>} : vector<16x1xi32>
    %c4_i32 = arith.constant 4 : i32
    %32 = vector.broadcast %c4_i32 : i32 to vector<16x1xi32>
    %33 = arith.cmpi sge, %31, %32 : vector<16x1xi32>
    %cst_4 = arith.constant 1.000000e-01 : f32
    %cst_5 = arith.constant 1.000000e+00 : f32
    %34 = vector.broadcast %cst_4 : f32 to vector<16x1xf32>
    %35 = vector.broadcast %cst_5 : f32 to vector<16x1xf32>
    %36 = arith.select %33, %34, %35 : vector<16x1xi1>, vector<16x1xf32>
    %c12_i32 = arith.constant 12 : i32
    %37 = vector.broadcast %c12_i32 : i32 to vector<16x1xi32>
    %38 = arith.cmpi sge, %31, %37 : vector<16x1xi32>
    %cst_6 = arith.constant 1.000000e-01 : f32
    %cst_7 = arith.constant 1.000000e+00 : f32
    %39 = vector.broadcast %cst_6 : f32 to vector<16x1xf32>
    %40 = vector.broadcast %cst_7 : f32 to vector<16x1xf32>
    %41 = arith.select %38, %39, %40 : vector<16x1xi1>, vector<16x1xf32>
    %c0_8 = arith.constant 0 : index
    %c0_9 = arith.constant 0 : index
    %42 = vector.load %arg1[%c0_8, %c0_9] : memref<16x256xbf16, #tpu.memory_space<vmem>>, vector<16x256xbf16>
    %43 = arith.extf %42 : vector<16x256xbf16> to vector<16x256xf32>
    %c1_i32_10 = arith.constant 1 : i32
    %44 = tpu.dynamic_rotate %43 by %c1_i32_10 dim 1 : vector<16x256xf32>, i32 -> vector<16x256xf32>
    %45 = arith.mulf %44, %24 : vector<16x256xf32>
    %c255_i32 = arith.constant 255 : i32
    %46 = tpu.dynamic_rotate %43 by %c255_i32 dim 1 : vector<16x256xf32>, i32 -> vector<16x256xf32>
    %47 = arith.mulf %46, %30 : vector<16x256xf32>
    %48 = arith.truncf %45 : vector<16x256xf32> to vector<16x256xbf16>
    %c0_11 = arith.constant 0 : index
    %c0_12 = arith.constant 0 : index
    %49 = vector.load %arg4[%c0_11, %c0_12] : memref<64x256xbf16, #tpu.memory_space<vmem>>, vector<16x256xbf16>
    tpu.vector_store %arg4[%c0_11, %c0_12], %48 {strides = array<i32>} : memref<64x256xbf16, #tpu.memory_space<vmem>>, vector<16x256xbf16>,
    %50 = arith.truncf %43 : vector<16x256xf32> to vector<16x256xbf16>
    %c16 = arith.constant 16 : index
    %c0_13 = arith.constant 0 : index
    %51 = vector.load %arg4[%c16, %c0_13] : memref<64x256xbf16, #tpu.memory_space<vmem>>, vector<16x256xbf16>
    tpu.vector_store %arg4[%c16, %c0_13], %50 {strides = array<i32>} : memref<64x256xbf16, #tpu.memory_space<vmem>>, vector<16x256xbf16>,
    %52 = arith.truncf %47 : vector<16x256xf32> to vector<16x256xbf16>
    %c32 = arith.constant 32 : index
    %c0_14 = arith.constant 0 : index
    %53 = vector.load %arg4[%c32, %c0_14] : memref<64x256xbf16, #tpu.memory_space<vmem>>, vector<16x256xbf16>
    tpu.vector_store %arg4[%c32, %c0_14], %52 {strides = array<i32>} : memref<64x256xbf16, #tpu.memory_space<vmem>>, vector<16x256xbf16>,
    %c0_15 = arith.constant 0 : index
    %c0_16 = arith.constant 0 : index
    %c0_17 = arith.constant 0 : index
    %54 = vector.load %arg2[%c0_15, %c0_16, %c0_17] : memref<4x16x64xbf16, #tpu.memory_space<vmem>>, vector<1x16x64xbf16>
    %55 = vector.shape_cast %54 : vector<1x16x64xbf16> to vector<16x64xbf16>
    %c0_18 = arith.constant 0 : index
    %c0_19 = arith.constant 0 : index
    %56 = vector.load %arg4[%c0_18, %c0_19] : memref<64x256xbf16, #tpu.memory_space<vmem>>, vector<64x256xbf16>
    %cst_20 = arith.constant dense<0.000000e+00> : vector<16x256xf32>
    %57 = tpu.matmul %55, %56, %cst_20 {dimension_numbers = #tpu.dot_dimension_numbers<[1], [0], [0], [1], [0, 0, 1, 1], [], []>} : vector<16x64xbf16>, vector<64x256xbf16>, vector<16x256xf32> -> vector<16x256xf32>
    %58 = vector.broadcast %36 : vector<16x1xf32> to vector<16x256xf32>
    %59 = arith.mulf %58, %57 : vector<16x256xf32>
    %60 = arith.maximumf %57, %59 : vector<16x256xf32>
    %c1_i32_21 = arith.constant 1 : i32
    %61 = tpu.dynamic_rotate %60 by %c1_i32_21 dim 1 : vector<16x256xf32>, i32 -> vector<16x256xf32>
    %62 = arith.mulf %61, %24 : vector<16x256xf32>
    %c255_i32_22 = arith.constant 255 : i32
    %63 = tpu.dynamic_rotate %60 by %c255_i32_22 dim 1 : vector<16x256xf32>, i32 -> vector<16x256xf32>
    %64 = arith.mulf %63, %30 : vector<16x256xf32>
    %65 = arith.truncf %62 : vector<16x256xf32> to vector<16x256xbf16>
    %c0_23 = arith.constant 0 : index
    %c0_24 = arith.constant 0 : index
    %66 = vector.load %arg4[%c0_23, %c0_24] : memref<64x256xbf16, #tpu.memory_space<vmem>>, vector<16x256xbf16>
    tpu.vector_store %arg4[%c0_23, %c0_24], %65 {strides = array<i32>} : memref<64x256xbf16, #tpu.memory_space<vmem>>, vector<16x256xbf16>,
    %67 = arith.truncf %60 : vector<16x256xf32> to vector<16x256xbf16>
    %c16_25 = arith.constant 16 : index
    %c0_26 = arith.constant 0 : index
    %68 = vector.load %arg4[%c16_25, %c0_26] : memref<64x256xbf16, #tpu.memory_space<vmem>>, vector<16x256xbf16>
    tpu.vector_store %arg4[%c16_25, %c0_26], %67 {strides = array<i32>} : memref<64x256xbf16, #tpu.memory_space<vmem>>, vector<16x256xbf16>,
    %69 = arith.truncf %64 : vector<16x256xf32> to vector<16x256xbf16>
    %c32_27 = arith.constant 32 : index
    %c0_28 = arith.constant 0 : index
    %70 = vector.load %arg4[%c32_27, %c0_28] : memref<64x256xbf16, #tpu.memory_space<vmem>>, vector<16x256xbf16>
    tpu.vector_store %arg4[%c32_27, %c0_28], %69 {strides = array<i32>} : memref<64x256xbf16, #tpu.memory_space<vmem>>, vector<16x256xbf16>,
    %c1 = arith.constant 1 : index
    %c0_29 = arith.constant 0 : index
    %c0_30 = arith.constant 0 : index
    %71 = vector.load %arg2[%c1, %c0_29, %c0_30] : memref<4x16x64xbf16, #tpu.memory_space<vmem>>, vector<1x16x64xbf16>
    %72 = vector.shape_cast %71 : vector<1x16x64xbf16> to vector<16x64xbf16>
    %c0_31 = arith.constant 0 : index
    %c0_32 = arith.constant 0 : index
    %73 = vector.load %arg4[%c0_31, %c0_32] : memref<64x256xbf16, #tpu.memory_space<vmem>>, vector<64x256xbf16>
    %cst_33 = arith.constant dense<0.000000e+00> : vector<16x256xf32>
    %74 = tpu.matmul %72, %73, %cst_33 {dimension_numbers = #tpu.dot_dimension_numbers<[1], [0], [0], [1], [0, 0, 1, 1], [], []>} : vector<16x64xbf16>, vector<64x256xbf16>, vector<16x256xf32> -> vector<16x256xf32>
    %75 = vector.broadcast %41 : vector<16x1xf32> to vector<16x256xf32>
    %76 = arith.mulf %75, %74 : vector<16x256xf32>
    %77 = arith.maximumf %74, %76 : vector<16x256xf32>
    %c1_i32_34 = arith.constant 1 : i32
    %78 = tpu.dynamic_rotate %77 by %c1_i32_34 dim 1 : vector<16x256xf32>, i32 -> vector<16x256xf32>
    %79 = arith.mulf %78, %24 : vector<16x256xf32>
    %c255_i32_35 = arith.constant 255 : i32
    %80 = tpu.dynamic_rotate %77 by %c255_i32_35 dim 1 : vector<16x256xf32>, i32 -> vector<16x256xf32>
    %81 = arith.mulf %80, %30 : vector<16x256xf32>
    %82 = arith.truncf %79 : vector<16x256xf32> to vector<16x256xbf16>
    %c0_36 = arith.constant 0 : index
    %c0_37 = arith.constant 0 : index
    %83 = vector.load %arg4[%c0_36, %c0_37] : memref<64x256xbf16, #tpu.memory_space<vmem>>, vector<16x256xbf16>
    tpu.vector_store %arg4[%c0_36, %c0_37], %82 {strides = array<i32>} : memref<64x256xbf16, #tpu.memory_space<vmem>>, vector<16x256xbf16>,
    %84 = arith.truncf %77 : vector<16x256xf32> to vector<16x256xbf16>
    %c16_38 = arith.constant 16 : index
    %c0_39 = arith.constant 0 : index
    %85 = vector.load %arg4[%c16_38, %c0_39] : memref<64x256xbf16, #tpu.memory_space<vmem>>, vector<16x256xbf16>
    tpu.vector_store %arg4[%c16_38, %c0_39], %84 {strides = array<i32>} : memref<64x256xbf16, #tpu.memory_space<vmem>>, vector<16x256xbf16>,
    %86 = arith.truncf %81 : vector<16x256xf32> to vector<16x256xbf16>
    %c32_40 = arith.constant 32 : index
    %c0_41 = arith.constant 0 : index
    %87 = vector.load %arg4[%c32_40, %c0_41] : memref<64x256xbf16, #tpu.memory_space<vmem>>, vector<16x256xbf16>
    tpu.vector_store %arg4[%c32_40, %c0_41], %86 {strides = array<i32>} : memref<64x256xbf16, #tpu.memory_space<vmem>>, vector<16x256xbf16>,
    %c2 = arith.constant 2 : index
    %c0_42 = arith.constant 0 : index
    %c0_43 = arith.constant 0 : index
    %88 = vector.load %arg2[%c2, %c0_42, %c0_43] : memref<4x16x64xbf16, #tpu.memory_space<vmem>>, vector<1x16x64xbf16>
    %89 = vector.shape_cast %88 : vector<1x16x64xbf16> to vector<16x64xbf16>
    %c0_44 = arith.constant 0 : index
    %c0_45 = arith.constant 0 : index
    %90 = vector.load %arg4[%c0_44, %c0_45] : memref<64x256xbf16, #tpu.memory_space<vmem>>, vector<64x256xbf16>
    %cst_46 = arith.constant dense<0.000000e+00> : vector<16x256xf32>
    %91 = tpu.matmul %89, %90, %cst_46 {dimension_numbers = #tpu.dot_dimension_numbers<[1], [0], [0], [1], [0, 0, 1, 1], [], []>} : vector<16x64xbf16>, vector<64x256xbf16>, vector<16x256xf32> -> vector<16x256xf32>
    %92 = vector.broadcast %41 : vector<16x1xf32> to vector<16x256xf32>
    %93 = arith.mulf %92, %91 : vector<16x256xf32>
    %94 = arith.maximumf %91, %93 : vector<16x256xf32>
    %c1_i32_47 = arith.constant 1 : i32
    %95 = tpu.dynamic_rotate %94 by %c1_i32_47 dim 1 : vector<16x256xf32>, i32 -> vector<16x256xf32>
    %96 = arith.mulf %95, %24 : vector<16x256xf32>
    %c255_i32_48 = arith.constant 255 : i32
    %97 = tpu.dynamic_rotate %94 by %c255_i32_48 dim 1 : vector<16x256xf32>, i32 -> vector<16x256xf32>
    %98 = arith.mulf %97, %30 : vector<16x256xf32>
    %99 = arith.truncf %96 : vector<16x256xf32> to vector<16x256xbf16>
    %c0_49 = arith.constant 0 : index
    %c0_50 = arith.constant 0 : index
    %100 = vector.load %arg4[%c0_49, %c0_50] : memref<64x256xbf16, #tpu.memory_space<vmem>>, vector<16x256xbf16>
    tpu.vector_store %arg4[%c0_49, %c0_50], %99 {strides = array<i32>} : memref<64x256xbf16, #tpu.memory_space<vmem>>, vector<16x256xbf16>,
    %101 = arith.truncf %94 : vector<16x256xf32> to vector<16x256xbf16>
    %c16_51 = arith.constant 16 : index
    %c0_52 = arith.constant 0 : index
    %102 = vector.load %arg4[%c16_51, %c0_52] : memref<64x256xbf16, #tpu.memory_space<vmem>>, vector<16x256xbf16>
    tpu.vector_store %arg4[%c16_51, %c0_52], %101 {strides = array<i32>} : memref<64x256xbf16, #tpu.memory_space<vmem>>, vector<16x256xbf16>,
    %103 = arith.truncf %98 : vector<16x256xf32> to vector<16x256xbf16>
    %c32_53 = arith.constant 32 : index
    %c0_54 = arith.constant 0 : index
    %104 = vector.load %arg4[%c32_53, %c0_54] : memref<64x256xbf16, #tpu.memory_space<vmem>>, vector<16x256xbf16>
    tpu.vector_store %arg4[%c32_53, %c0_54], %103 {strides = array<i32>} : memref<64x256xbf16, #tpu.memory_space<vmem>>, vector<16x256xbf16>,
    %c3 = arith.constant 3 : index
    %c0_55 = arith.constant 0 : index
    %c0_56 = arith.constant 0 : index
    %105 = vector.load %arg2[%c3, %c0_55, %c0_56] : memref<4x16x64xbf16, #tpu.memory_space<vmem>>, vector<1x16x64xbf16>
    %106 = vector.shape_cast %105 : vector<1x16x64xbf16> to vector<16x64xbf16>
    %c0_57 = arith.constant 0 : index
    %c0_58 = arith.constant 0 : index
    %107 = vector.load %arg4[%c0_57, %c0_58] : memref<64x256xbf16, #tpu.memory_space<vmem>>, vector<64x256xbf16>
    %cst_59 = arith.constant dense<0.000000e+00> : vector<16x256xf32>
    %108 = tpu.matmul %106, %107, %cst_59 {dimension_numbers = #tpu.dot_dimension_numbers<[1], [0], [0], [1], [0, 0, 1, 1], [], []>} : vector<16x64xbf16>, vector<64x256xbf16>, vector<16x256xf32> -> vector<16x256xf32>
    %109 = arith.addf %43, %108 : vector<16x256xf32>
    %cst_60 = arith.constant 1.000000e-01 : f32
    %110 = vector.broadcast %cst_60 : f32 to vector<16x256xf32>
    %111 = arith.mulf %110, %109 : vector<16x256xf32>
    %112 = arith.maximumf %109, %111 : vector<16x256xf32>
    %c0_61 = arith.constant 0 : index
    %c0_62 = arith.constant 0 : index
    %113 = vector.load %arg3[%c0_61, %c0_62] : memref<16x256xf32, #tpu.memory_space<vmem>>, vector<16x256xf32>
    tpu.vector_store %arg3[%c0_61, %c0_62], %112 {strides = array<i32>} : memref<16x256xf32, #tpu.memory_space<vmem>>, vector<16x256xf32>,
    return
  }
  func.func @transform_0(%arg0: i32) -> (i32, i32) {
    %c0_i32 = arith.constant 0 : i32
    %c0_i32_0 = arith.constant 0 : i32
    return %c0_i32, %arg0 : i32, i32
  }
  func.func @transform_1(%arg0: i32) -> (i32, i32, i32) {
    %c0_i32 = arith.constant 0 : i32
    %c0_i32_0 = arith.constant 0 : i32
    %c0_i32_1 = arith.constant 0 : i32
    %c0_i32_2 = arith.constant 0 : i32
    return %c0_i32, %c0_i32_0, %c0_i32_1 : i32, i32, i32
  }
  func.func @transform_2(%arg0: i32) -> (i32, i32) {
    %c0_i32 = arith.constant 0 : i32
    %c0_i32_0 = arith.constant 0 : i32
    return %c0_i32, %arg0 : i32, i32
  }
}

</mosaic_0001>

<llo_original>
// kernel: tpu_custom_call.1
$region0: #{tpu_custom_call.1}
  #allocation0 [shape = 'u32[]', space=smem, size = 0x4, offset = 0x4, fixed_abs, tag = 'smem constant byte address 0x4 - core index']
  #allocation1 [shape = 'u32[144,128]{1,0:T(1,128)}', space=vmem, size = 0x12000, scoped, tag = 'internal scratch']
  #allocation2 [shape = 'bf16[64,256]{1,0:T(8,128)(2,1)}', space=vmem, size = 0x8000, scoped, tag = 'scratch operand']
  %s0 = inlined_call_operand.hbm [shape: bf16[16,256], index: 0, kind: input, shape index: {}]
  %s1 = inlined_call_operand.hbm [shape: bf16[4,16,64], index: 1, kind: input, shape index: {}]
  %s2 = inlined_call_operand.hbm [shape: f32[16,256], index: 2, kind: output, shape index: {}]
  %s3 = sld [smem:[#allocation0]]
  $region26: #{tpu_custom_call.1} parent=0
    _
  %s5 = ssub.s32 1, %s3
  %s6 = scalar_select 0, %s5, %s3
  $region1: #{tpu_custom_call.1} parent=0
    #allocation3 [shape = 'u8[8192]{0}', space=vmem, size = 0x2000, scoped, tag = 'input window, operand 0, single buffered']
    #allocation4 [shape = 's32[1]{0}', space=sflag, size = 0x4, scoped, tag = 'scoped memory for tpu_custom_call.1']
    #allocation5 [shape = 's32[1]{0}', space=sflag, size = 0x4, scoped, tag = 'scoped memory for tpu_custom_call.1']
    #allocation6 [shape = 'u8[16384]{0}', space=vmem, size = 0x4000, scoped, tag = 'input window, operand 1, single buffered']
    #allocation7 [shape = 's32[1]{0}', space=sflag, size = 0x4, scoped, tag = 'scoped memory for tpu_custom_call.1']
    #allocation8 [shape = 'u8[16384]{0}', space=vmem, size = 0x4000, scoped, tag = 'output window, operand 0, single buffered']
    %7 = vsyncpa [#allocation4], 0
    %8 = vsyncpa [#allocation7], 0
    %9 = vsyncpa [#allocation5], 0
    // Predicated region
    $region2: #{tpu_custom_call.1} parent=1 // pred_check
      _
    $region3: #{tpu_custom_call.1} parent=1 // pred_check_branch
      %11 = sbr.rel (0) target = $region5
    $region4: #{tpu_custom_call.1} parent=1 // pred_region
      %s13 = ssub.s32 256, 256
      %14 = vsyncadd [#allocation4], %s13
      %s15 = sshll.u32 [#allocation3], 4
      %s16 = int_to_ptr.vmem [resolvable:$true] %s15
      %21 = dma.hbm_to_vmem [thread:$0]  %s0, 256, %s16, [#allocation4], 128, 128, 8
    $region5: #{tpu_custom_call.1} parent=1 // pred_fallthru
      _
    // Predicated region
    $region6: #{tpu_custom_call.1} parent=1 // pred_check
      _
    $region7: #{tpu_custom_call.1} parent=1 // pred_check_branch
      %23 = sbr.rel (0) target = $region9
    $region8: #{tpu_custom_call.1} parent=1 // pred_region
      %s25 = ssub.s32 512, 512
      %26 = vsyncadd [#allocation7], %s25
      %s27 = sshll.u32 [#allocation6], 4
      %s28 = int_to_ptr.vmem [resolvable:$true] %s27
      %33 = dma.hbm_to_vmem [thread:$0]  %s1, 512, %s28, [#allocation7], 64, 64, 4
    $region9: #{tpu_custom_call.1} parent=1 // pred_fallthru
      _
    // Predicated region
    $region10: #{tpu_custom_call.1} parent=1 // pred_check
      _
    $region11: #{tpu_custom_call.1} parent=1 // pred_check_branch
      %35 = sbr.rel (0) target = $region13
    $region12: #{tpu_custom_call.1} parent=1 // pred_region
      %36 = dma.done [#allocation4], 256
    $region13: #{tpu_custom_call.1} parent=1 // pred_fallthru
      _
    // Predicated region
    $region14: #{tpu_custom_call.1} parent=1 // pred_check
      _
    $region15: #{tpu_custom_call.1} parent=1 // pred_check_branch
      %38 = sbr.rel (0) target = $region17
    $region16: #{tpu_custom_call.1} parent=1 // pred_region
      %39 = dma.done [#allocation7], 512
    $region17: #{tpu_custom_call.1} parent=1 // pred_fallthru
      _
    %42 = vst [vmem:[#allocation2 + $0x30] sm:$0xff] 1065369472
    %43 = vst [vmem:[#allocation2 + $0x38] sm:$0xff] 1065369472
    %v44 = vlaneseq
    %v45 = vand.u32 %v44, 127
    %v46 = vadd.s32 %v45, 128
    %vm47 = vcmp.lt.s32.totalorder %v45, 0
    %v48 = vsub.s32 0, %v45
    %v49 = vsel %vm47, %v48, %v45
    %v50 = vshrl.u32 %v49, 7
    %v51 = vand.u32 %v49, 127
    %v52 = vsub.s32 0, %v51
    %v53 = vsel %vm47, %v52, %v51
    %vm54 = vcmp.lt.s32.totalorder %v46, 0
    %v55 = vsub.s32 0, %v46
    %v56 = vsel %vm54, %v55, %v46
    %v57 = vshrl.u32 %v56, 7
    %v58 = vand.u32 %v56, 127
    %v59 = vsub.s32 0, %v58
    %v60 = vsel %vm54, %v59, %v58
    %vm61 = vcmp.ne.s32.totalorder %v53, 0
    %vm62 = vcmp.ne.s32.totalorder %v60, 0
    %vm63 = vcmp.lt.s32.totalorder %v53, 0
    %vm64 = vcmp.lt.s32.totalorder %v60, 0
    %vm65 = vmand %vm63, %vm61
    %vm66 = vmand %vm64, %vm62
    %v67 = vadd.s32 %v53, 128
    %v68 = vadd.s32 %v60, 128
    %v69 = vsel %vm65, %v67, %v53
    %v70 = vsel %vm66, %v68, %v60
    %vm71 = vcmp.ne.s32.totalorder %v69, 0
    %vm72 = vcmp.ne.s32.totalorder %v70, 0
    %v73 = vsel %vm71, 1, 0
    %v74 = vsel %vm72, 1, 0
    %v75 = vcvt.s32.f32 %v73
    %v76 = vcvt.s32.f32 %v74
    %vm77 = vcmp.ne.s32.totalorder %v69, 127
    %vm78 = vcmp.ne.s32.totalorder %v70, 127
    %v79 = vsel %vm77, 1, 0
    %v80 = vsel %vm78, 1, 0
    %v81 = vcvt.s32.f32 %v79
    %v82 = vcvt.s32.f32 %v80
    %v83 = vlaneseq
    %v84 = vshrl.u32 %v83, 7
    %v85 = vadd.s32 %v84, 8
    %vm86 = vcmp.ge.s32.totalorder %v84, 4
    %vm87 = vcmp.ge.s32.totalorder %v85, 4
    %v88 = vsel %vm86, 0.1, 1.0
    %v89 = vsel %vm87, 0.1, 1.0
    %vm90 = vcmp.ge.s32.totalorder %v84, 12
    %vm91 = vcmp.ge.s32.totalorder %v85, 12
    %v92 = vsel %vm90, 0.1, 1.0
    %v93 = vsel %vm91, 0.1, 1.0
    %v94 = vld [vmem:[#allocation3] sm:$0xff]
    %v95 = vld [vmem:[#allocation3 + $0x8] sm:$0xff]
    %v96 = vunpack.c.l.bf16 %v94
    %v97 = vunpack.c.h.bf16 %v94
    %v98 = vunpack.c.l.bf16 %v95
    %v99 = vunpack.c.h.bf16 %v95
    %100 = vrot.lane.b32.xlu0 %v96, 1
    %v101 = vpop.permute.xlu0 %100
    %102 = vrot.lane.b32.xlu0 %v98, 1
    %v103 = vpop.permute.xlu0 %102
    %104 = vrot.lane.b32.xlu0 %v97, 1
    %v105 = vpop.permute.xlu0 %104
    %106 = vrot.lane.b32.xlu0 %v99, 1
    %v107 = vpop.permute.xlu0 %106
    %vm108 = vcmp.lt.s32.totalorder %v45, 1
    %v109 = vsel %vm108, %v101, %v105
    %v110 = vsel %vm108, %v103, %v107
    %v111 = vsel %vm108, %v105, %v101
    %v112 = vsel %vm108, %v107, %v103
    %v113 = vmul.f32 %v111, %v75
    %v114 = vmul.f32 %v109, %v76
    %v115 = vmul.f32 %v112, %v75
    %v116 = vmul.f32 %v110, %v76
    %117 = vrot.lane.b32.xlu0 %v96, 127
    %v118 = vpop.permute.xlu0 %117
    %119 = vrot.lane.b32.xlu0 %v98, 127
    %v120 = vpop.permute.xlu0 %119
    %121 = vrot.lane.b32.xlu0 %v97, 127
    %v122 = vpop.permute.xlu0 %121
    %123 = vrot.lane.b32.xlu0 %v99, 127
    %v124 = vpop.permute.xlu0 %123
    %vm125 = vcmp.lt.s32.totalorder %v45, 127
    %v126 = vsel %vm125, %v118, %v122
    %v127 = vsel %vm125, %v120, %v124
    %v128 = vsel %vm125, %v122, %v118
    %v129 = vsel %vm125, %v124, %v120
    %v130 = vmul.f32 %v126, %v81
    %v131 = vmul.f32 %v128, %v82
    %v132 = vmul.f32 %v127, %v81
    %v133 = vmul.f32 %v129, %v82
    %v134 = vpack.c.bf16 %v115, %v113
    %v135 = vpack.c.bf16 %v116, %v114
    %v138 = vunpack.c.l.b16 %v134
    %v139 = vunpack.c.l.b16 %v135
    %v140 = vunpack.c.h.b16 %v134
    %v141 = vunpack.c.h.b16 %v135
    %v142 = vpack.c.b16 %v139, %v138
    %v143 = vpack.c.b16 %v141, %v140
    %146 = vst [vmem:[#allocation2] sm:$0xff] %v142
    %147 = vst [vmem:[#allocation2 + $0x8] sm:$0xff] %v143
    %148 = vst [vmem:[#allocation2 + $0x10] sm:$0xff] %v94
    %149 = vst [vmem:[#allocation2 + $0x18] sm:$0xff] %v95
    %v150 = vpack.c.bf16 %v132, %v130
    %v151 = vpack.c.bf16 %v133, %v131
    %v154 = vunpack.c.l.b16 %v150
    %v155 = vunpack.c.l.b16 %v151
    %v156 = vunpack.c.h.b16 %v150
    %v157 = vunpack.c.h.b16 %v151
    %v158 = vpack.c.b16 %v155, %v154
    %v159 = vpack.c.b16 %v157, %v156
    %162 = vst [vmem:[#allocation2 + $0x20] sm:$0xff] %v158
    %163 = vst [vmem:[#allocation2 + $0x28] sm:$0xff] %v159
    %v164 = vld [vmem:[#allocation6] sm:$0xf]
    %v165 = vld [vmem:[#allocation6 + $0x4] sm:$0xf]
    %v166 = vld [vmem:[#allocation2] sm:$0xff]
    %v167 = vld [vmem:[#allocation2 + $0x8] sm:$0xff]
    %v168 = vld [vmem:[#allocation2 + $0x10] sm:$0xff]
    %v169 = vld [vmem:[#allocation2 + $0x18] sm:$0xff]
    %v170 = vld [vmem:[#allocation2 + $0x20] sm:$0xff]
    %v171 = vld [vmem:[#allocation2 + $0x28] sm:$0xff]
    %v172 = vld [vmem:[#allocation2 + $0x30] sm:$0xff]
    %v173 = vld [vmem:[#allocation2 + $0x38] sm:$0xff]
    %v176 = vunpack.c.l.b16 %v164
    %v177 = vunpack.c.l.b16 %v165
    %v178 = vpack.c.b16 %v177, %v176
    %v187 = vunpack.c.l.b16 %v166
    %v188 = vunpack.c.h.b16 %v166
    %v189 = vunpack.c.l.b16 %v167
    %v190 = vunpack.c.h.b16 %v167
    %v191 = vunpack.c.l.b16 %v168
    %v192 = vunpack.c.h.b16 %v168
    %v193 = vunpack.c.l.b16 %v169
    %v194 = vunpack.c.h.b16 %v169
    %v195 = vunpack.c.l.b16 %v170
    %v196 = vunpack.c.h.b16 %v170
    %v197 = vunpack.c.l.b16 %v171
    %v198 = vunpack.c.h.b16 %v171
    %v199 = vunpack.c.l.b16 %v172
    %v200 = vunpack.c.h.b16 %v172
    %v201 = vunpack.c.l.b16 %v173
    %v202 = vunpack.c.h.b16 %v173
    %v203 = vpack.c.b16 %v189, %v187
    %v204 = vpack.c.b16 %v190, %v188
    %v205 = vpack.c.b16 %v193, %v191
    %v206 = vpack.c.b16 %v194, %v192
    %v207 = vpack.c.b16 %v197, %v195
    %v208 = vpack.c.b16 %v198, %v196
    %v209 = vpack.c.b16 %v201, %v199
    %v210 = vpack.c.b16 %v202, %v200
    %vm219 = vcmask 523264
    %v221 = vsel %vm219, %v178, 0
    %223 = vmatprep.subr.bf16.mxu0 0
    %224 = vmatpush1.bf16.msra.mxu0 0
    %225 = vmatprep.subr.bf16.mxu0 0
    %226 = vmatpush1.bf16.msra.mxu0 0
    %227 = vmatprep.subr.bf16.mxu0 0
    %228 = vmatpush1.bf16.msra.mxu0 0
    %229 = vmatprep.subr.bf16.mxu0 0
    %230 = vmatpush1.bf16.msra.mxu0 0
    %231 = vmatprep.subr.bf16.mxu0 %v210
    %232 = vmatpush1.bf16.msra.mxu0 %v209
    %233 = vmatprep.subr.bf16.mxu0 %v208
    %234 = vmatpush1.bf16.msra.mxu0 %v207
    %235 = vmatprep.subr.bf16.mxu0 %v206
    %236 = vmatpush1.bf16.msra.mxu0 %v205
    %237 = vmatprep.subr.bf16.mxu0 %v204
    %238 = vmatpush1.bf16.msra.mxu0 %v203
    %239 = vmatprep.subr.bf16.mxu0 0
    %240 = vmatpush2.bf16.msra.mxu0 0
    %241 = vmatprep.subr.bf16.mxu0 0
    %242 = vmatpush2.bf16.msra.mxu0 0
    %243 = vmatprep.subr.bf16.mxu0 0
    %244 = vmatpush2.bf16.msra.mxu0 0
    %245 = vmatprep.subr.bf16.mxu0 0
    %246 = vmatpush2.bf16.msra.mxu0 0
    %247 = vmatprep.subr.bf16.mxu0 0
    %248 = vmatpush2.bf16.msra.mxu0 0
    %249 = vmatprep.subr.bf16.mxu0 0
    %250 = vmatpush2.bf16.msra.mxu0 0
    %251 = vmatprep.subr.bf16.mxu0 0
    %252 = vmatpush2.bf16.msra.mxu0 0
    %253 = vmatprep.subr.bf16.mxu0 0
    %254 = vmatpush2.bf16.msra.mxu0 0
    %255 = vmatprep.mubr.bf16.mxu0 0
    %256 = vmatmul.mubr.bf16.gmra.mxu0 %v221
    %v257 = vpop.f32.mrf.mxu0
    %v258 = vadd.f32 0.0, %v257
    %v259 = vpop.f32.mrf.mxu0
    %v260 = vadd.f32 0.0, %v259
    %v261 = vpop.f32.mrf.mxu0
    %v262 = vadd.f32 0.0, %v261
    %v263 = vpop.f32.mrf.mxu0
    %v264 = vadd.f32 0.0, %v263
    %265 = vdwg.mxu0
    %v266 = vmul.f32 %v88, %v258
    %v267 = vmul.f32 %v88, %v260
    %v268 = vmul.f32 %v89, %v262
    %v269 = vmul.f32 %v89, %v264
    %v270 = vmax.f32 %v258, %v266
    %v271 = vmax.f32 %v260, %v267
    %v272 = vmax.f32 %v262, %v268
    %v273 = vmax.f32 %v264, %v269
    %274 = vrot.lane.b32.xlu0 %v270, 1
    %v275 = vpop.permute.xlu0 %274
    %276 = vrot.lane.b32.xlu0 %v272, 1
    %v277 = vpop.permute.xlu0 %276
    %278 = vrot.lane.b32.xlu0 %v271, 1
    %v279 = vpop.permute.xlu0 %278
    %280 = vrot.lane.b32.xlu0 %v273, 1
    %v281 = vpop.permute.xlu0 %280
    %v282 = vsel %vm108, %v275, %v279
    %v283 = vsel %vm108, %v277, %v281
    %v284 = vsel %vm108, %v279, %v275
    %v285 = vsel %vm108, %v281, %v277
    %v286 = vmul.f32 %v284, %v75
    %v287 = vmul.f32 %v282, %v76
    %v288 = vmul.f32 %v285, %v75
    %v289 = vmul.f32 %v283, %v76
    %290 = vrot.lane.b32.xlu0 %v270, 127
    %v291 = vpop.permute.xlu0 %290
    %292 = vrot.lane.b32.xlu0 %v272, 127
    %v293 = vpop.permute.xlu0 %292
    %294 = vrot.lane.b32.xlu0 %v271, 127
    %v295 = vpop.permute.xlu0 %294
    %296 = vrot.lane.b32.xlu0 %v273, 127
    %v297 = vpop.permute.xlu0 %296
    %v298 = vsel %vm125, %v291, %v295
    %v299 = vsel %vm125, %v293, %v297
    %v300 = vsel %vm125, %v295, %v291
    %v301 = vsel %vm125, %v297, %v293
    %v302 = vmul.f32 %v298, %v81
    %v303 = vmul.f32 %v300, %v82
    %v304 = vmul.f32 %v299, %v81
    %v305 = vmul.f32 %v301, %v82
    %v306 = vpack.c.bf16 %v288, %v286
    %v307 = vpack.c.bf16 %v289, %v287
    %v310 = vunpack.c.l.b16 %v306
    %v311 = vunpack.c.l.b16 %v307
    %v312 = vunpack.c.h.b16 %v306
    %v313 = vunpack.c.h.b16 %v307
    %v314 = vpack.c.b16 %v311, %v310
    %v315 = vpack.c.b16 %v313, %v312
    %318 = vst [vmem:[#allocation2] sm:$0xff] %v314
    %319 = vst [vmem:[#allocation2 + $0x8] sm:$0xff] %v315
    %v320 = vpack.c.bf16 %v272, %v270
    %v321 = vpack.c.bf16 %v273, %v271
    %v324 = vunpack.c.l.b16 %v320
    %v325 = vunpack.c.l.b16 %v321
    %v326 = vunpack.c.h.b16 %v320
    %v327 = vunpack.c.h.b16 %v321
    %v328 = vpack.c.b16 %v325, %v324
    %v329 = vpack.c.b16 %v327, %v326
    %332 = vst [vmem:[#allocation2 + $0x10] sm:$0xff] %v328
    %333 = vst [vmem:[#allocation2 + $0x18] sm:$0xff] %v329
    %v334 = vpack.c.bf16 %v304, %v302
    %v335 = vpack.c.bf16 %v305, %v303
    %v338 = vunpack.c.l.b16 %v334
    %v339 = vunpack.c.l.b16 %v335
    %v340 = vunpack.c.h.b16 %v334
    %v341 = vunpack.c.h.b16 %v335
    %v342 = vpack.c.b16 %v339, %v338
    %v343 = vpack.c.b16 %v341, %v340
    %346 = vst [vmem:[#allocation2 + $0x20] sm:$0xff] %v342
    %347 = vst [vmem:[#allocation2 + $0x28] sm:$0xff] %v343
    %s348 = scalar_lea.vmem [#allocation6], 8
    %v349 = vld [vmem:[%s348] sm:$0xf]
    %v350 = vld [vmem:[%s348 + $0x4] sm:$0xf]
    %v351 = vld [vmem:[#allocation2] sm:$0xff]
    %v352 = vld [vmem:[#allocation2 + $0x8] sm:$0xff]
    %v353 = vld [vmem:[#allocation2 + $0x10] sm:$0xff]
    %v354 = vld [vmem:[#allocation2 + $0x18] sm:$0xff]
    %v355 = vld [vmem:[#allocation2 + $0x20] sm:$0xff]
    %v356 = vld [vmem:[#allocation2 + $0x28] sm:$0xff]
    %v357 = vld [vmem:[#allocation2 + $0x30] sm:$0xff]
    %v358 = vld [vmem:[#allocation2 + $0x38] sm:$0xff]
    %v361 = vunpack.c.l.b16 %v349
    %v362 = vunpack.c.l.b16 %v350
    %v363 = vpack.c.b16 %v362, %v361
    %v372 = vunpack.c.l.b16 %v351
    %v373 = vunpack.c.h.b16 %v351
    %v374 = vunpack.c.l.b16 %v352
    %v375 = vunpack.c.h.b16 %v352
    %v376 = vunpack.c.l.b16 %v353
    %v377 = vunpack.c.h.b16 %v353
    %v378 = vunpack.c.l.b16 %v354
    %v379 = vunpack.c.h.b16 %v354
    %v380 = vunpack.c.l.b16 %v355
    %v381 = vunpack.c.h.b16 %v355
    %v382 = vunpack.c.l.b16 %v356
    %v383 = vunpack.c.h.b16 %v356
    %v384 = vunpack.c.l.b16 %v357
    %v385 = vunpack.c.h.b16 %v357
    %v386 = vunpack.c.l.b16 %v358
    %v387 = vunpack.c.h.b16 %v358
    %v388 = vpack.c.b16 %v374, %v372
    %v389 = vpack.c.b16 %v375, %v373
    %v390 = vpack.c.b16 %v378, %v376
    %v391 = vpack.c.b16 %v379, %v377
    %v392 = vpack.c.b16 %v382, %v380
    %v393 = vpack.c.b16 %v383, %v381
    %v394 = vpack.c.b16 %v386, %v384
    %v395 = vpack.c.b16 %v387, %v385
    %v405 = vsel %vm219, %v363, 0
    %407 = vmatprep.subr.bf16.mxu0 0
    %408 = vmatpush1.bf16.msra.mxu0 0
    %409 = vmatprep.subr.bf16.mxu0 0
    %410 = vmatpush1.bf16.msra.mxu0 0
    %411 = vmatprep.subr.bf16.mxu0 0
    %412 = vmatpush1.bf16.msra.mxu0 0
    %413 = vmatprep.subr.bf16.mxu0 0
    %414 = vmatpush1.bf16.msra.mxu0 0
    %415 = vmatprep.subr.bf16.mxu0 %v395
    %416 = vmatpush1.bf16.msra.mxu0 %v394
    %417 = vmatprep.subr.bf16.mxu0 %v393
    %418 = vmatpush1.bf16.msra.mxu0 %v392
    %419 = vmatprep.subr.bf16.mxu0 %v391
    %420 = vmatpush1.bf16.msra.mxu0 %v390
    %421 = vmatprep.subr.bf16.mxu0 %v389
    %422 = vmatpush1.bf16.msra.mxu0 %v388
    %423 = vmatprep.subr.bf16.mxu0 0
    %424 = vmatpush2.bf16.msra.mxu0 0
    %425 = vmatprep.subr.bf16.mxu0 0
    %426 = vmatpush2.bf16.msra.mxu0 0
    %427 = vmatprep.subr.bf16.mxu0 0
    %428 = vmatpush2.bf16.msra.mxu0 0
    %429 = vmatprep.subr.bf16.mxu0 0
    %430 = vmatpush2.bf16.msra.mxu0 0
    %431 = vmatprep.subr.bf16.mxu0 0
    %432 = vmatpush2.bf16.msra.mxu0 0
    %433 = vmatprep.subr.bf16.mxu0 0
    %434 = vmatpush2.bf16.msra.mxu0 0
    %435 = vmatprep.subr.bf16.mxu0 0
    %436 = vmatpush2.bf16.msra.mxu0 0
    %437 = vmatprep.subr.bf16.mxu0 0
    %438 = vmatpush2.bf16.msra.mxu0 0
    %439 = vmatprep.mubr.bf16.mxu0 0
    %440 = vmatmul.mubr.bf16.gmra.mxu0 %v405
    %v441 = vpop.f32.mrf.mxu0
    %v442 = vadd.f32 0.0, %v441
    %v443 = vpop.f32.mrf.mxu0
    %v444 = vadd.f32 0.0, %v443
    %v445 = vpop.f32.mrf.mxu0
    %v446 = vadd.f32 0.0, %v445
    %v447 = vpop.f32.mrf.mxu0
    %v448 = vadd.f32 0.0, %v447
    %449 = vdwg.mxu0
    %v450 = vmul.f32 %v92, %v442
    %v451 = vmul.f32 %v92, %v444
    %v452 = vmul.f32 %v93, %v446
    %v453 = vmul.f32 %v93, %v448
    %v454 = vmax.f32 %v442, %v450
    %v455 = vmax.f32 %v444, %v451
    %v456 = vmax.f32 %v446, %v452
    %v457 = vmax.f32 %v448, %v453
    %458 = vrot.lane.b32.xlu0 %v454, 1
    %v459 = vpop.permute.xlu0 %458
    %460 = vrot.lane.b32.xlu0 %v456, 1
    %v461 = vpop.permute.xlu0 %460
    %462 = vrot.lane.b32.xlu0 %v455, 1
    %v463 = vpop.permute.xlu0 %462
    %464 = vrot.lane.b32.xlu0 %v457, 1
    %v465 = vpop.permute.xlu0 %464
    %v466 = vsel %vm108, %v459, %v463
    %v467 = vsel %vm108, %v461, %v465
    %v468 = vsel %vm108, %v463, %v459
    %v469 = vsel %vm108, %v465, %v461
    %v470 = vmul.f32 %v468, %v75
    %v471 = vmul.f32 %v466, %v76
    %v472 = vmul.f32 %v469, %v75
    %v473 = vmul.f32 %v467, %v76
    %474 = vrot.lane.b32.xlu0 %v454, 127
    %v475 = vpop.permute.xlu0 %474
    %476 = vrot.lane.b32.xlu0 %v456, 127
    %v477 = vpop.permute.xlu0 %476
    %478 = vrot.lane.b32.xlu0 %v455, 127
    %v479 = vpop.permute.xlu0 %478
    %480 = vrot.lane.b32.xlu0 %v457, 127
    %v481 = vpop.permute.xlu0 %480
    %v482 = vsel %vm125, %v475, %v479
    %v483 = vsel %vm125, %v477, %v481
    %v484 = vsel %vm125, %v479, %v475
    %v485 = vsel %vm125, %v481, %v477
    %v486 = vmul.f32 %v482, %v81
    %v487 = vmul.f32 %v484, %v82
    %v488 = vmul.f32 %v483, %v81
    %v489 = vmul.f32 %v485, %v82
    %v490 = vpack.c.bf16 %v472, %v470
    %v491 = vpack.c.bf16 %v473, %v471
    %v494 = vunpack.c.l.b16 %v490
    %v495 = vunpack.c.l.b16 %v491
    %v496 = vunpack.c.h.b16 %v490
    %v497 = vunpack.c.h.b16 %v491
    %v498 = vpack.c.b16 %v495, %v494
    %v499 = vpack.c.b16 %v497, %v496
    %502 = vst [vmem:[#allocation2] sm:$0xff] %v498
    %503 = vst [vmem:[#allocation2 + $0x8] sm:$0xff] %v499
    %v504 = vpack.c.bf16 %v456, %v454
    %v505 = vpack.c.bf16 %v457, %v455
    %v508 = vunpack.c.l.b16 %v504
    %v509 = vunpack.c.l.b16 %v505
    %v510 = vunpack.c.h.b16 %v504
    %v511 = vunpack.c.h.b16 %v505
    %v512 = vpack.c.b16 %v509, %v508
    %v513 = vpack.c.b16 %v511, %v510
    %516 = vst [vmem:[#allocation2 + $0x10] sm:$0xff] %v512
    %517 = vst [vmem:[#allocation2 + $0x18] sm:$0xff] %v513
    %v518 = vpack.c.bf16 %v488, %v486
    %v519 = vpack.c.bf16 %v489, %v487
    %v522 = vunpack.c.l.b16 %v518
    %v523 = vunpack.c.l.b16 %v519
    %v524 = vunpack.c.h.b16 %v518
    %v525 = vunpack.c.h.b16 %v519
    %v526 = vpack.c.b16 %v523, %v522
    %v527 = vpack.c.b16 %v525, %v524
    %530 = vst [vmem:[#allocation2 + $0x20] sm:$0xff] %v526
    %531 = vst [vmem:[#allocation2 + $0x28] sm:$0xff] %v527
    %s532 = scalar_lea.vmem [#allocation6], 16
    %v533 = vld [vmem:[%s532] sm:$0xf]
    %v534 = vld [vmem:[%s532 + $0x4] sm:$0xf]
    %v535 = vld [vmem:[#allocation2] sm:$0xff]
    %v536 = vld [vmem:[#allocation2 + $0x8] sm:$0xff]
    %v537 = vld [vmem:[#allocation2 + $0x10] sm:$0xff]
    %v538 = vld [vmem:[#allocation2 + $0x18] sm:$0xff]
    %v539 = vld [vmem:[#allocation2 + $0x20] sm:$0xff]
    %v540 = vld [vmem:[#allocation2 + $0x28] sm:$0xff]
    %v541 = vld [vmem:[#allocation2 + $0x30] sm:$0xff]
    %v542 = vld [vmem:[#allocation2 + $0x38] sm:$0xff]
    %v545 = vunpack.c.l.b16 %v533
    %v546 = vunpack.c.l.b16 %v534
    %v547 = vpack.c.b16 %v546, %v545
    %v556 = vunpack.c.l.b16 %v535
    %v557 = vunpack.c.h.b16 %v535
    %v558 = vunpack.c.l.b16 %v536
    %v559 = vunpack.c.h.b16 %v536
    %v560 = vunpack.c.l.b16 %v537
    %v561 = vunpack.c.h.b16 %v537
    %v562 = vunpack.c.l.b16 %v538
    %v563 = vunpack.c.h.b16 %v538
    %v564 = vunpack.c.l.b16 %v539
    %v565 = vunpack.c.h.b16 %v539
    %v566 = vunpack.c.l.b16 %v540
    %v567 = vunpack.c.h.b16 %v540
    %v568 = vunpack.c.l.b16 %v541
    %v569 = vunpack.c.h.b16 %v541
    %v570 = vunpack.c.l.b16 %v542
    %v571 = vunpack.c.h.b16 %v542
    %v572 = vpack.c.b16 %v558, %v556
    %v573 = vpack.c.b16 %v559, %v557
    %v574 = vpack.c.b16 %v562, %v560
    %v575 = vpack.c.b16 %v563, %v561
    %v576 = vpack.c.b16 %v566, %v564
    %v577 = vpack.c.b16 %v567, %v565
    %v578 = vpack.c.b16 %v570, %v568
    %v579 = vpack.c.b16 %v571, %v569
    %v589 = vsel %vm219, %v547, 0
    %591 = vmatprep.subr.bf16.mxu0 0
    %592 = vmatpush1.bf16.msra.mxu0 0
    %593 = vmatprep.subr.bf16.mxu0 0
    %594 = vmatpush1.bf16.msra.mxu0 0
    %595 = vmatprep.subr.bf16.mxu0 0
    %596 = vmatpush1.bf16.msra.mxu0 0
    %597 = vmatprep.subr.bf16.mxu0 0
    %598 = vmatpush1.bf16.msra.mxu0 0
    %599 = vmatprep.subr.bf16.mxu0 %v579
    %600 = vmatpush1.bf16.msra.mxu0 %v578
    %601 = vmatprep.subr.bf16.mxu0 %v577
    %602 = vmatpush1.bf16.msra.mxu0 %v576
    %603 = vmatprep.subr.bf16.mxu0 %v575
    %604 = vmatpush1.bf16.msra.mxu0 %v574
    %605 = vmatprep.subr.bf16.mxu0 %v573
    %606 = vmatpush1.bf16.msra.mxu0 %v572
    %607 = vmatprep.subr.bf16.mxu0 0
    %608 = vmatpush2.bf16.msra.mxu0 0
    %609 = vmatprep.subr.bf16.mxu0 0
    %610 = vmatpush2.bf16.msra.mxu0 0
    %611 = vmatprep.subr.bf16.mxu0 0
    %612 = vmatpush2.bf16.msra.mxu0 0
    %613 = vmatprep.subr.bf16.mxu0 0
    %614 = vmatpush2.bf16.msra.mxu0 0
    %615 = vmatprep.subr.bf16.mxu0 0
    %616 = vmatpush2.bf16.msra.mxu0 0
    %617 = vmatprep.subr.bf16.mxu0 0
    %618 = vmatpush2.bf16.msra.mxu0 0
    %619 = vmatprep.subr.bf16.mxu0 0
    %620 = vmatpush2.bf16.msra.mxu0 0
    %621 = vmatprep.subr.bf16.mxu0 0
    %622 = vmatpush2.bf16.msra.mxu0 0
    %623 = vmatprep.mubr.bf16.mxu0 0
    %624 = vmatmul.mubr.bf16.gmra.mxu0 %v589
    %v625 = vpop.f32.mrf.mxu0
    %v626 = vadd.f32 0.0, %v625
    %v627 = vpop.f32.mrf.mxu0
    %v628 = vadd.f32 0.0, %v627
    %v629 = vpop.f32.mrf.mxu0
    %v630 = vadd.f32 0.0, %v629
    %v631 = vpop.f32.mrf.mxu0
    %v632 = vadd.f32 0.0, %v631
    %633 = vdwg.mxu0
    %v634 = vmul.f32 %v92, %v626
    %v635 = vmul.f32 %v92, %v628
    %v636 = vmul.f32 %v93, %v630
    %v637 = vmul.f32 %v93, %v632
    %v638 = vmax.f32 %v626, %v634
    %v639 = vmax.f32 %v628, %v635
    %v640 = vmax.f32 %v630, %v636
    %v641 = vmax.f32 %v632, %v637
    %642 = vrot.lane.b32.xlu0 %v638, 1
    %v643 = vpop.permute.xlu0 %642
    %644 = vrot.lane.b32.xlu0 %v640, 1
    %v645 = vpop.permute.xlu0 %644
    %646 = vrot.lane.b32.xlu0 %v639, 1
    %v647 = vpop.permute.xlu0 %646
    %648 = vrot.lane.b32.xlu0 %v641, 1
    %v649 = vpop.permute.xlu0 %648
    %v650 = vsel %vm108, %v643, %v647
    %v651 = vsel %vm108, %v645, %v649
    %v652 = vsel %vm108, %v647, %v643
    %v653 = vsel %vm108, %v649, %v645
    %v654 = vmul.f32 %v652, %v75
    %v655 = vmul.f32 %v650, %v76
    %v656 = vmul.f32 %v653, %v75
    %v657 = vmul.f32 %v651, %v76
    %658 = vrot.lane.b32.xlu0 %v638, 127
    %v659 = vpop.permute.xlu0 %658
    %660 = vrot.lane.b32.xlu0 %v640, 127
    %v661 = vpop.permute.xlu0 %660
    %662 = vrot.lane.b32.xlu0 %v639, 127
    %v663 = vpop.permute.xlu0 %662
    %664 = vrot.lane.b32.xlu0 %v641, 127
    %v665 = vpop.permute.xlu0 %664
    %v666 = vsel %vm125, %v659, %v663
    %v667 = vsel %vm125, %v661, %v665
    %v668 = vsel %vm125, %v663, %v659
    %v669 = vsel %vm125, %v665, %v661
    %v670 = vmul.f32 %v666, %v81
    %v671 = vmul.f32 %v668, %v82
    %v672 = vmul.f32 %v667, %v81
    %v673 = vmul.f32 %v669, %v82
    %v674 = vpack.c.bf16 %v656, %v654
    %v675 = vpack.c.bf16 %v657, %v655
    %v678 = vunpack.c.l.b16 %v674
    %v679 = vunpack.c.l.b16 %v675
    %v680 = vunpack.c.h.b16 %v674
    %v681 = vunpack.c.h.b16 %v675
    %v682 = vpack.c.b16 %v679, %v678
    %v683 = vpack.c.b16 %v681, %v680
    %686 = vst [vmem:[#allocation2] sm:$0xff] %v682
    %687 = vst [vmem:[#allocation2 + $0x8] sm:$0xff] %v683
    %v688 = vpack.c.bf16 %v640, %v638
    %v689 = vpack.c.bf16 %v641, %v639
    %v692 = vunpack.c.l.b16 %v688
    %v693 = vunpack.c.l.b16 %v689
    %v694 = vunpack.c.h.b16 %v688
    %v695 = vunpack.c.h.b16 %v689
    %v696 = vpack.c.b16 %v693, %v692
    %v697 = vpack.c.b16 %v695, %v694
    %700 = vst [vmem:[#allocation2 + $0x10] sm:$0xff] %v696
    %701 = vst [vmem:[#allocation2 + $0x18] sm:$0xff] %v697
    %v702 = vpack.c.bf16 %v672, %v670
    %v703 = vpack.c.bf16 %v673, %v671
    %v706 = vunpack.c.l.b16 %v702
    %v707 = vunpack.c.l.b16 %v703
    %v708 = vunpack.c.h.b16 %v702
    %v709 = vunpack.c.h.b16 %v703
    %v710 = vpack.c.b16 %v707, %v706
    %v711 = vpack.c.b16 %v709, %v708
    %714 = vst [vmem:[#allocation2 + $0x20] sm:$0xff] %v710
    %715 = vst [vmem:[#allocation2 + $0x28] sm:$0xff] %v711
    %s716 = scalar_lea.vmem [#allocation6], 24
    %v717 = vld [vmem:[%s716] sm:$0xf]
    %v718 = vld [vmem:[%s716 + $0x4] sm:$0xf]
    %v719 = vld [vmem:[#allocation2] sm:$0xff]
    %v720 = vld [vmem:[#allocation2 + $0x8] sm:$0xff]
    %v721 = vld [vmem:[#allocation2 + $0x10] sm:$0xff]
    %v722 = vld [vmem:[#allocation2 + $0x18] sm:$0xff]
    %v723 = vld [vmem:[#allocation2 + $0x20] sm:$0xff]
    %v724 = vld [vmem:[#allocation2 + $0x28] sm:$0xff]
    %v725 = vld [vmem:[#allocation2 + $0x30] sm:$0xff]
    %v726 = vld [vmem:[#allocation2 + $0x38] sm:$0xff]
    %v729 = vunpack.c.l.b16 %v717
    %v730 = vunpack.c.l.b16 %v718
    %v731 = vpack.c.b16 %v730, %v729
    %v740 = vunpack.c.l.b16 %v719
    %v741 = vunpack.c.h.b16 %v719
    %v742 = vunpack.c.l.b16 %v720
    %v743 = vunpack.c.h.b16 %v720
    %v744 = vunpack.c.l.b16 %v721
    %v745 = vunpack.c.h.b16 %v721
    %v746 = vunpack.c.l.b16 %v722
    %v747 = vunpack.c.h.b16 %v722
    %v748 = vunpack.c.l.b16 %v723
    %v749 = vunpack.c.h.b16 %v723
    %v750 = vunpack.c.l.b16 %v724
    %v751 = vunpack.c.h.b16 %v724
    %v752 = vunpack.c.l.b16 %v725
    %v753 = vunpack.c.h.b16 %v725
    %v754 = vunpack.c.l.b16 %v726
    %v755 = vunpack.c.h.b16 %v726
    %v756 = vpack.c.b16 %v742, %v740
    %v757 = vpack.c.b16 %v743, %v741
    %v758 = vpack.c.b16 %v746, %v744
    %v759 = vpack.c.b16 %v747, %v745
    %v760 = vpack.c.b16 %v750, %v748
    %v761 = vpack.c.b16 %v751, %v749
    %v762 = vpack.c.b16 %v754, %v752
    %v763 = vpack.c.b16 %v755, %v753
    %v773 = vsel %vm219, %v731, 0
    %775 = vmatprep.subr.bf16.mxu0 0
    %776 = vmatpush1.bf16.msra.mxu0 0
    %777 = vmatprep.subr.bf16.mxu0 0
    %778 = vmatpush1.bf16.msra.mxu0 0
    %779 = vmatprep.subr.bf16.mxu0 0
    %780 = vmatpush1.bf16.msra.mxu0 0
    %781 = vmatprep.subr.bf16.mxu0 0
    %782 = vmatpush1.bf16.msra.mxu0 0
    %783 = vmatprep.subr.bf16.mxu0 %v763
    %784 = vmatpush1.bf16.msra.mxu0 %v762
    %785 = vmatprep.subr.bf16.mxu0 %v761
    %786 = vmatpush1.bf16.msra.mxu0 %v760
    %787 = vmatprep.subr.bf16.mxu0 %v759
    %788 = vmatpush1.bf16.msra.mxu0 %v758
    %789 = vmatprep.subr.bf16.mxu0 %v757
    %790 = vmatpush1.bf16.msra.mxu0 %v756
    %791 = vmatprep.subr.bf16.mxu0 0
    %792 = vmatpush2.bf16.msra.mxu0 0
    %793 = vmatprep.subr.bf16.mxu0 0
    %794 = vmatpush2.bf16.msra.mxu0 0
    %795 = vmatprep.subr.bf16.mxu0 0
    %796 = vmatpush2.bf16.msra.mxu0 0
    %797 = vmatprep.subr.bf16.mxu0 0
    %798 = vmatpush2.bf16.msra.mxu0 0
    %799 = vmatprep.subr.bf16.mxu0 0
    %800 = vmatpush2.bf16.msra.mxu0 0
    %801 = vmatprep.subr.bf16.mxu0 0
    %802 = vmatpush2.bf16.msra.mxu0 0
    %803 = vmatprep.subr.bf16.mxu0 0
    %804 = vmatpush2.bf16.msra.mxu0 0
    %805 = vmatprep.subr.bf16.mxu0 0
    %806 = vmatpush2.bf16.msra.mxu0 0
    %807 = vmatprep.mubr.bf16.mxu0 0
    %808 = vmatmul.mubr.bf16.gmra.mxu0 %v773
    %v809 = vpop.f32.mrf.mxu0
    %v810 = vadd.f32 0.0, %v809
    %v811 = vpop.f32.mrf.mxu0
    %v812 = vadd.f32 0.0, %v811
    %v813 = vpop.f32.mrf.mxu0
    %v814 = vadd.f32 0.0, %v813
    %v815 = vpop.f32.mrf.mxu0
    %v816 = vadd.f32 0.0, %v815
    %817 = vdwg.mxu0
    %v818 = vadd.f32 %v96, %v810
    %v819 = vadd.f32 %v97, %v812
    %v820 = vadd.f32 %v98, %v814
    %v821 = vadd.f32 %v99, %v816
    %v822 = vmul.f32 %v818, 0.1
    %v823 = vmul.f32 %v819, 0.1
    %v824 = vmul.f32 %v820, 0.1
    %v825 = vmul.f32 %v821, 0.1
    %v826 = vmax.f32 %v818, %v822
    %v827 = vmax.f32 %v819, %v823
    %v828 = vmax.f32 %v820, %v824
    %v829 = vmax.f32 %v821, %v825
    %830 = vst [vmem:[#allocation8] sm:$0xff] %v826
    %831 = vst [vmem:[#allocation8 + $0x8] sm:$0xff] %v827
    %832 = vst [vmem:[#allocation8 + $0x10] sm:$0xff] %v828
    %833 = vst [vmem:[#allocation8 + $0x18] sm:$0xff] %v829
    // Predicated region
    $region18: #{tpu_custom_call.1} parent=1 // pred_check
      _
    $region19: #{tpu_custom_call.1} parent=1 // pred_check_branch
      %835 = sbr.rel (0) target = $region21
    $region20: #{tpu_custom_call.1} parent=1 // pred_region
      %s837 = ssub.s32 512, 512
      %838 = vsyncadd [#allocation5], %s837
      %s839 = sshll.u32 [#allocation8], 4
      %s840 = int_to_ptr.vmem [resolvable:$true] %s839
      %845 = dma.vmem_to_hbm [thread:$0]  %s840, 512, %s2, [#allocation5], 256, 256, 16
    $region21: #{tpu_custom_call.1} parent=1 // pred_fallthru
      _
    // Predicated region
    $region22: #{tpu_custom_call.1} parent=1 // pred_check
      _
    $region23: #{tpu_custom_call.1} parent=1 // pred_check_branch
      %847 = sbr.rel (0) target = $region25
    $region24: #{tpu_custom_call.1} parent=1 // pred_region
      %848 = dma.done [#allocation5], 512
    $region25: #{tpu_custom_call.1} parent=1 // pred_fallthru
      _
    %849 = vsyncpa [#allocation4], 1
    %850 = vsyncpa [#allocation7], 1
    %851 = vsyncpa [#allocation5], 1

</llo_original>
